<compile_context>
chip_gen: v6e
topology: v6e:2x2x1
jax: 0.10.0
libtpu: 0.0.40
codegen_flags: <defaults>
</compile_context>

<pallas_src>
import jax
import jax.numpy as jnp
import numpy as np
from jax.experimental import pallas as pl
from jax.experimental.pallas import tpu as pltpu

SIGMA = 0.1


def _round_up(x, m):
    return (x + m - 1) // m * m


def ccf_kernel(z_ref, ycls_ref, yreg_ref, w_ref, b_ref, rs_ref, ewc_ref, out_ref):
    z = z_ref[...]                                      # (tb, D) f32
    tb, _ = z.shape
    kc = ycls_ref.shape[1]
    kr = yreg_ref.shape[1]
    c = (w_ref.shape[1] - kr) // kc                     # classes per cls head

    # One fused MXU matmul for all classification + regression heads.
    logits = jnp.dot(z, w_ref[...],
                     preferred_element_type=jnp.float32) + b_ref[...]   # (tb, N)

    # Prior term: -0.5 * ||z||^2   (== -torch.norm(z, dim=1)**2 * 0.5)
    energy = -0.5 * jnp.sum(z * z, axis=1, keepdims=True)               # (tb, 1)

    # Classification heads: gather(logits, y) - logsumexp(logits).
    ycls = ycls_ref[...]                                                # (tb, kc) i32
    class_iota = jax.lax.broadcasted_iota(jnp.int32, (tb, c), 1)        # hoisted
    for k in range(kc):
        lg = logits[:, k * c:(k + 1) * c]                               # (tb, c)
        onehot = (class_iota == ycls[:, k:k + 1]).astype(jnp.float32)
        sel = jnp.sum(lg * onehot, axis=1, keepdims=True)               # (tb, 1)
        m = jnp.max(lg, axis=1, keepdims=True)
        lse = m + jnp.log(jnp.sum(jnp.exp(lg - m), axis=1, keepdims=True))
        energy = energy + ewc_ref[k] * (sel - lse)

    # Regression heads (n_classes == 1): ew * (-|logit - y|^2 * 0.5 / sigma^2),
    # with ew * (-0.5 / sigma^2) pre-folded into rs_ref.
    diff = logits[:, kc * c:] - yreg_ref[...]                           # (tb, kr)
    energy = energy + jnp.sum(rs_ref[...] * diff * diff, axis=1, keepdims=True)

    # Lane-dense store: batch lives in the lane axis of the (1, tb) output block.
    out_ref[...] = jnp.sum(energy, axis=1)[None, :]


def ccf_forward(z, y, wc, bc, ewc, wr, br, ewr, *, tb=512):
    """z: (B, D); y: (B, Kc+Kr) (first Kc cols = labels, rest = float targets)."""
    B, D = z.shape
    Kc, _, C = wc.shape
    Kr = wr.shape[1]
    N = Kc * C + Kr

    # Split y: int32 labels (truncated like torch .long()) + f32 targets.
    y_cls = y[:, :Kc].astype(jnp.int32)
    y_reg = y[:, Kc:].astype(jnp.float32)

    # Fuse all heads into one (D, Kc*C + Kr) weight matrix + one bias row.
    w_all = jnp.concatenate(
        [jnp.transpose(wc, (1, 0, 2)).reshape(D, Kc * C),
         wr.astype(jnp.float32)], axis=1)
    b_all = jnp.concatenate(
        [bc.reshape(1, Kc * C), br.reshape(1, Kr)], axis=1).astype(jnp.float32)
    reg_scale = (ewr.reshape(1, Kr) * (-0.5 / SIGMA ** 2)).astype(jnp.float32)
    ewc_vec = ewc.reshape(Kc).astype(jnp.float32)       # per-head scalars -> SMEM

    # Tile the batch; pad tail rows so any B is handled.
    if B <= tb:
        tb_eff = max(8, _round_up(B, 8))                # single tile (== full pad)
    else:
        tb_eff = tb                                     # multiple of 128 -> lane-dense
    B_pad = _round_up(B, tb_eff)
    pad = B_pad - B
    if pad:
        z = jnp.pad(z, ((0, pad), (0, 0)))
        y_cls = jnp.pad(y_cls, ((0, pad), (0, 0)))
        y_reg = jnp.pad(y_reg, ((0, pad), (0, 0)))
    num_tiles = B_pad // tb_eff

    out = pl.pallas_call(
        ccf_kernel,
        out_shape=jax.ShapeDtypeStruct((1, B_pad), jnp.float32),
        grid_spec=pltpu.PrefetchScalarGridSpec(
            num_scalar_prefetch=0,
            grid=(num_tiles,),
            in_specs=[
                pl.BlockSpec((tb_eff, D), lambda i: (i, 0)),            # z
                pl.BlockSpec((tb_eff, Kc), lambda i: (i, 0)),           # labels (i32)
                pl.BlockSpec((tb_eff, Kr), lambda i: (i, 0)),           # reg targets
                pl.BlockSpec((D, N), lambda i: (0, 0)),                 # fused weights
                pl.BlockSpec((1, N), lambda i: (0, 0)),                 # fused bias
                pl.BlockSpec((1, Kr), lambda i: (0, 0)),                # reg energy scale
                pl.BlockSpec(memory_space=pltpu.MemorySpace.SMEM),      # cls energy weights
            ],
            out_specs=pl.BlockSpec((1, tb_eff), lambda i: (0, i)),      # lane-dense
        ),
        compiler_params=pltpu.CompilerParams(
            dimension_semantics=("parallel",)),
    )(z, y_cls, y_reg, w_all, b_all, reg_scale, ewc_vec)
    return out[0, :B]


def ref_forward(z, y, wc, bc, ewc, wr, br, ewr):
    """Plain-JAX reference mirroring the PyTorch CCF.forward."""
    energy = -0.5 * jnp.sum(z * z, axis=1)
    kc = wc.shape[0]
    for k in range(kc):
        logits = z @ wc[k] + bc[k]
        yk = y[:, k].astype(jnp.int32)
        sel = jnp.take_along_axis(logits, yk[:, None], axis=1)[:, 0]
        lse = jax.scipy.special.logsumexp(logits, axis=1)
        energy = energy + ewc[0, k] * (sel - lse)
    logits_r = z @ wr + br
    diff = logits_r - y[:, kc:]
    energy = energy + jnp.sum(ewr * (-(diff ** 2) * 0.5 / (SIGMA ** 2)), axis=1)
    return energy


if __name__ == "__main__":
    Kc, C, Kr, D = 2, 8, 1, 32      # 2 classification heads (8 classes), 1 regression head

    key = jax.random.PRNGKey(0)
    kz, kw1, kb1, kw2, kb2 = jax.random.split(key, 5)

    wc = jax.random.normal(kw1, (Kc, D, C), dtype=jnp.float32) * 0.1
    bc = jax.random.normal(kb1, (Kc, C), dtype=jnp.float32) * 0.1
    ewc = jnp.array([[1.0, 0.5]], dtype=jnp.float32)
    wr = jax.random.normal(kw2, (D, Kr), dtype=jnp.float32) * 0.1
    br = jax.random.normal(kb2, (1, Kr), dtype=jnp.float32) * 0.1
    ewr = jnp.array([[2.0]], dtype=jnp.float32)

    # Two configs: single padded tile (B=100) and multi-tile with tail padding (B=1040).
    for B in (100, 1040):
        kz_b, ky_b, kyr_b = jax.random.split(jax.random.fold_in(kz, B), 3)
        z = jax.random.normal(kz_b, (B, D), dtype=jnp.float32)
        y_cls = jax.random.randint(ky_b, (B, Kc), 0, C).astype(jnp.float32)
        y_reg = jax.random.normal(kyr_b, (B, Kr), dtype=jnp.float32)
        y = jnp.concatenate([y_cls, y_reg], axis=1)

        out = jax.block_until_ready(
            ccf_forward(z, y, wc, bc, ewc, wr, br, ewr, tb=512))
        ref = ref_forward(z, y, wc, bc, ewc, wr, br, ewr)
        np.testing.assert_allclose(np.asarray(out), np.asarray(ref),
                                   rtol=1e-4, atol=1e-4)

    print("KERNEL_OK")
</pallas_src>

<mosaic_0001>
module attributes {stable_mosaic.version = 11 : i64} {
  func.func @ccf_kernel(%arg0: i32, %arg1: memref<104x32xf32, #tpu.memory_space<vmem>>, %arg2: memref<104x2xi32, #tpu.memory_space<vmem>>, %arg3: memref<104x1xf32, #tpu.memory_space<vmem>>, %arg4: memref<32x17xf32, #tpu.memory_space<vmem>>, %arg5: memref<1x17xf32, #tpu.memory_space<vmem>>, %arg6: memref<1x1xf32, #tpu.memory_space<vmem>>, %arg7: memref<2xf32, #tpu.memory_space<smem>>, %arg8: memref<1x104xf32, #tpu.memory_space<vmem>>) attributes {dimension_semantics = [#tpu.dimension_semantics<parallel>], iteration_bounds = array<i64: 1>, scalar_prefetch = 0 : i64, scratch_operands = 0 : i64, tpu.core_type = #tpu.core_type<tc>, window_params = [{transform_indices = @transform_0, window_bounds = array<i64: 104, 32>}, {transform_indices = @transform_1, window_bounds = array<i64: 104, 2>}, {transform_indices = @transform_2, window_bounds = array<i64: 104, 1>}, {pipeline_mode = #tpu.pipeline_mode<synchronous>, transform_indices = @transform_3, window_bounds = array<i64: 32, 17>}, {pipeline_mode = #tpu.pipeline_mode<synchronous>, transform_indices = @transform_4, window_bounds = array<i64: 1, 17>}, {pipeline_mode = #tpu.pipeline_mode<synchronous>, transform_indices = @transform_5, window_bounds = array<i64: 1, 1>}, {transform_indices = @transform_6, window_bounds = array<i64: 2>}, {transform_indices = @transform_7, window_bounds = array<i64: 1, 104>}]} {
    %c0 = arith.constant 0 : index
    %c0_0 = arith.constant 0 : index
    %0 = vector.load %arg1[%c0, %c0_0] : memref<104x32xf32, #tpu.memory_space<vmem>>, vector<104x32xf32>
    %c0_1 = arith.constant 0 : index
    %c0_2 = arith.constant 0 : index
    %1 = vector.load %arg4[%c0_1, %c0_2] : memref<32x17xf32, #tpu.memory_space<vmem>>, vector<32x17xf32>
    %cst = arith.constant dense<0.000000e+00> : vector<104x17xf32>
    %2 = tpu.matmul %0, %1, %cst {dimension_numbers = #tpu.dot_dimension_numbers<[1], [0], [0], [1], [0, 0, 1, 1], [], []>} : vector<104x32xf32>, vector<32x17xf32>, vector<104x17xf32> -> vector<104x17xf32>
    %c0_3 = arith.constant 0 : index
    %c0_4 = arith.constant 0 : index
    %3 = vector.load %arg5[%c0_3, %c0_4] : memref<1x17xf32, #tpu.memory_space<vmem>>, vector<1x17xf32>
    %4 = vector.broadcast %3 : vector<1x17xf32> to vector<104x17xf32>
    %5 = arith.addf %2, %4 : vector<104x17xf32>
    %6 = arith.mulf %0, %0 : vector<104x32xf32>
    %cst_5 = arith.constant dense<0.000000e+00> : vector<104xf32>
    %7 = vector.multi_reduction <add>, %6, %cst_5 [1] : vector<104x32xf32> to vector<104xf32>
    %8 = vector.shape_cast %7 : vector<104xf32> to vector<104x1xf32>
    %cst_6 = arith.constant -5.000000e-01 : f32
    %9 = vector.broadcast %cst_6 : f32 to vector<104x1xf32>
    %10 = arith.mulf %9, %8 : vector<104x1xf32>
    %c0_7 = arith.constant 0 : index
    %c0_8 = arith.constant 0 : index
    %11 = vector.load %arg2[%c0_7, %c0_8] : memref<104x2xi32, #tpu.memory_space<vmem>>, vector<104x2xi32>
    %12 = tpu.iota {dimensions = array<i32: 1>} : vector<104x8xi32>
    %13 = vector.extract_strided_slice %5 {offsets = [0, 0], sizes = [104, 8], strides = [1, 1]} : vector<104x17xf32> to vector<104x8xf32>
    %14 = vector.extract_strided_slice %11 {offsets = [0, 0], sizes = [104, 1], strides = [1, 1]} : vector<104x2xi32> to vector<104x1xi32>
    %15 = vector.broadcast %14 : vector<104x1xi32> to vector<104x8xi32>
    %16 = arith.cmpi eq, %12, %15 : vector<104x8xi32>
    %17 = arith.extui %16 : vector<104x8xi1> to vector<104x8xi32>
    %18 = arith.sitofp %17 : vector<104x8xi32> to vector<104x8xf32>
    %19 = arith.mulf %13, %18 : vector<104x8xf32>
    %cst_9 = arith.constant dense<0.000000e+00> : vector<104xf32>
    %20 = vector.multi_reduction <add>, %19, %cst_9 [1] : vector<104x8xf32> to vector<104xf32>
    %21 = vector.shape_cast %20 : vector<104xf32> to vector<104x1xf32>
    %cst_10 = arith.constant dense<0xFF800000> : vector<104xf32>
    %22 = vector.multi_reduction <maximumf>, %13, %cst_10 [1] : vector<104x8xf32> to vector<104xf32>
    %23 = vector.shape_cast %22 : vector<104xf32> to vector<104x1xf32>
    %24 = vector.broadcast %23 : vector<104x1xf32> to vector<104x8xf32>
    %25 = arith.subf %13, %24 : vector<104x8xf32>
    %26 = math.exp %25 : vector<104x8xf32>
    %cst_11 = arith.constant dense<0.000000e+00> : vector<104xf32>
    %27 = vector.multi_reduction <add>, %26, %cst_11 [1] : vector<104x8xf32> to vector<104xf32>
    %28 = vector.shape_cast %27 : vector<104xf32> to vector<104x1xf32>
    %29 = math.log %28 : vector<104x1xf32>
    %30 = arith.addf %23, %29 : vector<104x1xf32>
    %c0_12 = arith.constant 0 : index
    %31 = memref.load %arg7[%c0_12] : memref<2xf32, #tpu.memory_space<smem>>
    %32 = arith.subf %21, %30 : vector<104x1xf32>
    %33 = vector.broadcast %31 : f32 to vector<104x1xf32>
    %34 = arith.mulf %33, %32 : vector<104x1xf32>
    %35 = arith.addf %10, %34 : vector<104x1xf32>
    %36 = vector.extract_strided_slice %5 {offsets = [0, 8], sizes = [104, 8], strides = [1, 1]} : vector<104x17xf32> to vector<104x8xf32>
    %37 = vector.extract_strided_slice %11 {offsets = [0, 1], sizes = [104, 1], strides = [1, 1]} : vector<104x2xi32> to vector<104x1xi32>
    %38 = vector.broadcast %37 : vector<104x1xi32> to vector<104x8xi32>
    %39 = arith.cmpi eq, %12, %38 : vector<104x8xi32>
    %40 = arith.extui %39 : vector<104x8xi1> to vector<104x8xi32>
    %41 = arith.sitofp %40 : vector<104x8xi32> to vector<104x8xf32>
    %42 = arith.mulf %36, %41 : vector<104x8xf32>
    %cst_13 = arith.constant dense<0.000000e+00> : vector<104xf32>
    %43 = vector.multi_reduction <add>, %42, %cst_13 [1] : vector<104x8xf32> to vector<104xf32>
    %44 = vector.shape_cast %43 : vector<104xf32> to vector<104x1xf32>
    %cst_14 = arith.constant dense<0xFF800000> : vector<104xf32>
    %45 = vector.multi_reduction <maximumf>, %36, %cst_14 [1] : vector<104x8xf32> to vector<104xf32>
    %46 = vector.shape_cast %45 : vector<104xf32> to vector<104x1xf32>
    %47 = vector.broadcast %46 : vector<104x1xf32> to vector<104x8xf32>
    %48 = arith.subf %36, %47 : vector<104x8xf32>
    %49 = math.exp %48 : vector<104x8xf32>
    %cst_15 = arith.constant dense<0.000000e+00> : vector<104xf32>
    %50 = vector.multi_reduction <add>, %49, %cst_15 [1] : vector<104x8xf32> to vector<104xf32>
    %51 = vector.shape_cast %50 : vector<104xf32> to vector<104x1xf32>
    %52 = math.log %51 : vector<104x1xf32>
    %53 = arith.addf %46, %52 : vector<104x1xf32>
    %c1 = arith.constant 1 : index
    %54 = memref.load %arg7[%c1] : memref<2xf32, #tpu.memory_space<smem>>
    %55 = arith.subf %44, %53 : vector<104x1xf32>
    %56 = vector.broadcast %54 : f32 to vector<104x1xf32>
    %57 = arith.mulf %56, %55 : vector<104x1xf32>
    %58 = arith.addf %35, %57 : vector<104x1xf32>
    %59 = vector.extract_strided_slice %5 {offsets = [0, 16], sizes = [104, 1], strides = [1, 1]} : vector<104x17xf32> to vector<104x1xf32>
    %c0_16 = arith.constant 0 : index
    %c0_17 = arith.constant 0 : index
    %60 = vector.load %arg3[%c0_16, %c0_17] : memref<104x1xf32, #tpu.memory_space<vmem>>, vector<104x1xf32>
    %61 = arith.subf %59, %60 : vector<104x1xf32>
    %c0_18 = arith.constant 0 : index
    %c0_19 = arith.constant 0 : index
    %62 = vector.load %arg6[%c0_18, %c0_19] : memref<1x1xf32, #tpu.memory_space<vmem>>, vector<1x1xf32>
    %63 = vector.broadcast %62 : vector<1x1xf32> to vector<104x1xf32>
    %64 = arith.mulf %63, %61 : vector<104x1xf32>
    %65 = arith.mulf %64, %61 : vector<104x1xf32>
    %cst_20 = arith.constant dense<0.000000e+00> : vector<104xf32>
    %66 = vector.multi_reduction <add>, %65, %cst_20 [1] : vector<104x1xf32> to vector<104xf32>
    %67 = vector.shape_cast %66 : vector<104xf32> to vector<104x1xf32>
    %68 = arith.addf %58, %67 : vector<104x1xf32>
    %cst_21 = arith.constant dense<0.000000e+00> : vector<104xf32>
    %69 = vector.multi_reduction <add>, %68, %cst_21 [1] : vector<104x1xf32> to vector<104xf32>
    %70 = vector.shape_cast %69 : vector<104xf32> to vector<1x104xf32>
    %c0_22 = arith.constant 0 : index
    %c0_23 = arith.constant 0 : index
    %71 = vector.load %arg8[%c0_22, %c0_23] : memref<1x104xf32, #tpu.memory_space<vmem>>, vector<1x104xf32>
    tpu.vector_store %arg8[%c0_22, %c0_23], %70 {strides = array<i32>} : memref<1x104xf32, #tpu.memory_space<vmem>>, vector<1x104xf32>,
    return
  }
  func.func @transform_0(%arg0: i32) -> (i32, i32) {
    %c0_i32 = arith.constant 0 : i32
    %c0_i32_0 = arith.constant 0 : i32
    return %arg0, %c0_i32 : i32, i32
  }
  func.func @transform_1(%arg0: i32) -> (i32, i32) {
    %c0_i32 = arith.constant 0 : i32
    %c0_i32_0 = arith.constant 0 : i32
    return %arg0, %c0_i32 : i32, i32
  }
  func.func @transform_2(%arg0: i32) -> (i32, i32) {
    %c0_i32 = arith.constant 0 : i32
    %c0_i32_0 = arith.constant 0 : i32
    return %arg0, %c0_i32 : i32, i32
  }
  func.func @transform_3(%arg0: i32) -> (i32, i32) {
    %c0_i32 = arith.constant 0 : i32
    %c0_i32_0 = arith.constant 0 : i32
    %c0_i32_1 = arith.constant 0 : i32
    return %c0_i32, %c0_i32_0 : i32, i32
  }
  func.func @transform_4(%arg0: i32) -> (i32, i32) {
    %c0_i32 = arith.constant 0 : i32
    %c0_i32_0 = arith.constant 0 : i32
    %c0_i32_1 = arith.constant 0 : i32
    return %c0_i32, %c0_i32_0 : i32, i32
  }
  func.func @transform_5(%arg0: i32) -> (i32, i32) {
    %c0_i32 = arith.constant 0 : i32
    %c0_i32_0 = arith.constant 0 : i32
    %c0_i32_1 = arith.constant 0 : i32
    return %c0_i32, %c0_i32_0 : i32, i32
  }
  func.func @transform_6(%arg0: i32) -> i32 {
    %c0_i32 = arith.constant 0 : i32
    %c0_i32_0 = arith.constant 0 : i32
    return %c0_i32 : i32
  }
  func.func @transform_7(%arg0: i32) -> (i32, i32) {
    %c0_i32 = arith.constant 0 : i32
    %c0_i32_0 = arith.constant 0 : i32
    return %c0_i32, %arg0 : i32, i32
  }
}

</mosaic_0001>

<llo_original>
// kernel: tpu_custom_call.1
$region0: #{tpu_custom_call.1}
  #allocation0 [shape = 'u32[]', space=smem, size = 0x4, offset = 0x4, fixed_abs, tag = 'smem constant byte address 0x4 - core index']
  #allocation1 [shape = 'u32[144,128]{1,0:T(1,128)}', space=vmem, size = 0x12000, scoped, tag = 'internal scratch']
  #allocation2 [shape = 'f32[1,1]{1,0:T(1,128)S(1)}', space=vmem, size = 0x200, scoped, tag = 'scoped memory for tpu_custom_call.1']
  %s0 = inlined_call_operand.vmem [shape: f32[104,32], index: 0, kind: input, shape index: {}]
  %s1 = inlined_call_operand.vmem [shape: s32[104,2], index: 1, kind: input, shape index: {}]
  %s2 = inlined_call_operand.vmem [shape: f32[104,1], index: 2, kind: input, shape index: {}]
  %s3 = inlined_call_operand.vmem [shape: f32[32,17], index: 3, kind: input, shape index: {}]
  %s4 = inlined_call_operand.vmem [shape: f32[1,17], index: 4, kind: input, shape index: {}]
  %s5 = inlined_call_operand.<no memory space> [shape: f32[1,1], index: 5, kind: input, shape index: {}]
  %s6 = inlined_call_operand.vmem [shape: f32[2], index: 6, kind: input, shape index: {}]
  %s7 = inlined_call_operand.hbm [shape: f32[1,104], index: 7, kind: output, shape index: {}]
  %s8 = sld [smem:[#allocation0]]
  $region42: #{tpu_custom_call.1} parent=0
    _
  %s10 = ssub.s32 1, %s8
  %s11 = scalar_select 0, %s10, %s8
  %v12 = vstv %s5
  %13 = vst [vmem:[#allocation2] sm:$0x1] %v12
  $region1: #{tpu_custom_call.1} parent=0
    #allocation3 [shape = 'u8[512]{0}', space=smem, size = 0x200, scoped, tag = 'input window, operand 6, single buffered']
    #allocation4 [shape = 's32[1]{0}', space=sflag, size = 0x4, scoped, tag = 'scoped memory for tpu_custom_call.1']
    #allocation5 [shape = 's32[1]{0}', space=sflag, size = 0x4, scoped, tag = 'scoped memory for tpu_custom_call.1']
    #allocation6 [shape = 'u8[512]{0}', space=vmem, size = 0x400, scoped, tag = 'output window, operand 0, single buffered']
    %14 = vsyncpa [#allocation5], 0
    %15 = vsyncpa [#allocation4], 0
    // Predicated region
    $region2: #{tpu_custom_call.1} parent=1 // pred_check
      _
    $region3: #{tpu_custom_call.1} parent=1 // pred_check_branch
      %17 = sbr.rel (0) target = $region5
    $region4: #{tpu_custom_call.1} parent=1 // pred_region
      _
    $region5: #{tpu_custom_call.1} parent=1 // pred_fallthru
      _
    // Predicated region
    $region6: #{tpu_custom_call.1} parent=1 // pred_check
      _
    $region7: #{tpu_custom_call.1} parent=1 // pred_check_branch
      %19 = sbr.rel (0) target = $region9
    $region8: #{tpu_custom_call.1} parent=1 // pred_region
      _
    $region9: #{tpu_custom_call.1} parent=1 // pred_fallthru
      _
    // Predicated region
    $region10: #{tpu_custom_call.1} parent=1 // pred_check
      _
    $region11: #{tpu_custom_call.1} parent=1 // pred_check_branch
      %21 = sbr.rel (0) target = $region13
    $region12: #{tpu_custom_call.1} parent=1 // pred_region
      _
    $region13: #{tpu_custom_call.1} parent=1 // pred_fallthru
      _
    // Predicated region
    $region14: #{tpu_custom_call.1} parent=1 // pred_check
      _
    $region15: #{tpu_custom_call.1} parent=1 // pred_check_branch
      %23 = sbr.rel (0) target = $region17
    $region16: #{tpu_custom_call.1} parent=1 // pred_region
      _
    $region17: #{tpu_custom_call.1} parent=1 // pred_fallthru
      _
    // Predicated region
    $region18: #{tpu_custom_call.1} parent=1 // pred_check
      _
    $region19: #{tpu_custom_call.1} parent=1 // pred_check_branch
      %25 = sbr.rel (0) target = $region21
    $region20: #{tpu_custom_call.1} parent=1 // pred_region
      _
    $region21: #{tpu_custom_call.1} parent=1 // pred_fallthru
      _
    // Predicated region
    $region22: #{tpu_custom_call.1} parent=1 // pred_check
      _
    $region23: #{tpu_custom_call.1} parent=1 // pred_check_branch
      %27 = sbr.rel (0) target = $region25
    $region24: #{tpu_custom_call.1} parent=1 // pred_region
      _
    $region25: #{tpu_custom_call.1} parent=1 // pred_fallthru
      _
    // Predicated region
    $region26: #{tpu_custom_call.1} parent=1 // pred_check
      _
    $region27: #{tpu_custom_call.1} parent=1 // pred_check_branch
      %29 = sbr.rel (0) target = $region29
    $region28: #{tpu_custom_call.1} parent=1 // pred_region
      %s31 = ssub.s32 16, 16
      %32 = vsyncadd [#allocation5], %s31
      %s34 = sshll.u32 %s6, 4
      %s35 = int_to_ptr.vmem [resolvable:$true] %s34
      %37 = dma.vmem_to_smem %s35, 16, [#allocation3], [#allocation5]
    $region29: #{tpu_custom_call.1} parent=1 // pred_fallthru
      _
    // Predicated region
    $region30: #{tpu_custom_call.1} parent=1 // pred_check
      _
    $region31: #{tpu_custom_call.1} parent=1 // pred_check_branch
      %39 = sbr.rel (0) target = $region33
    $region32: #{tpu_custom_call.1} parent=1 // pred_region
      %40 = dma.done [#allocation5], 16
    $region33: #{tpu_custom_call.1} parent=1 // pred_fallthru
      _
    %41 = sfence
    %v42 = vld [vmem:[%s0] sm:$0xff]
    %v43 = vld [vmem:[%s0 + $0x8] sm:$0xff]
    %v44 = vld [vmem:[%s0 + $0x10] sm:$0xff]
    %v45 = vld [vmem:[%s0 + $0x18] sm:$0xff]
    %v46 = vld [vmem:[%s0 + $0x20] sm:$0xff]
    %v47 = vld [vmem:[%s0 + $0x28] sm:$0xff]
    %v48 = vld [vmem:[%s0 + $0x30] sm:$0xff]
    %v49 = vld [vmem:[%s0 + $0x38] sm:$0xff]
    %v50 = vld [vmem:[%s0 + $0x40] sm:$0xff]
    %v51 = vld [vmem:[%s0 + $0x48] sm:$0xff]
    %v52 = vld [vmem:[%s0 + $0x50] sm:$0xff]
    %v53 = vld [vmem:[%s0 + $0x58] sm:$0xff]
    %v54 = vld [vmem:[%s0 + $0x60] sm:$0xff]
    %v55 = vld [vmem:[%s3] sm:$0xff]
    %v56 = vld [vmem:[%s3 + $0x8] sm:$0xff]
    %v57 = vld [vmem:[%s3 + $0x10] sm:$0xff]
    %v58 = vld [vmem:[%s3 + $0x18] sm:$0xff]
    %v59 = vld [vmem:[%s4] sm:$0x1]
    %v61 = vlaneseq
    %v62 = vshrl.u32 %v61, 7
    %v63 = vsub.s32 0, %v62
    %v64 = vrot.slane %v59, %v63
    %vm66 = vcmask 261120
    %v68 = vsel %vm66, %v42, 0
    %v71 = vsel %vm66, %v43, 0
    %v74 = vsel %vm66, %v44, 0
    %v77 = vsel %vm66, %v45, 0
    %v80 = vsel %vm66, %v46, 0
    %v83 = vsel %vm66, %v47, 0
    %v86 = vsel %vm66, %v48, 0
    %v89 = vsel %vm66, %v49, 0
    %v92 = vsel %vm66, %v50, 0
    %v95 = vsel %vm66, %v51, 0
    %v98 = vsel %vm66, %v52, 0
    %v101 = vsel %vm66, %v53, 0
    %v104 = vsel %vm66, %v54, 0
    %106 = vmatprep.subr.mxu0 0.0
    %107 = vmatpush1.msra.mxu0 0.0
    %108 = vmatprep.subr.mxu0 0.0
    %109 = vmatpush1.msra.mxu0 0.0
    %110 = vmatprep.subr.mxu0 0.0
    %111 = vmatpush1.msra.mxu0 0.0
    %112 = vmatprep.subr.mxu0 0.0
    %113 = vmatpush1.msra.mxu0 0.0
    %114 = vmatprep.subr.mxu0 0.0
    %115 = vmatpush1.msra.mxu0 0.0
    %116 = vmatprep.subr.mxu0 0.0
    %117 = vmatpush1.msra.mxu0 0.0
    %118 = vmatprep.subr.mxu0 0.0
    %119 = vmatpush1.msra.mxu0 0.0
    %120 = vmatprep.subr.mxu0 0.0
    %121 = vmatpush1.msra.mxu0 0.0
    %122 = vmatprep.subr.mxu0 0.0
    %123 = vmatpush1.msra.mxu0 0.0
    %124 = vmatprep.subr.mxu0 0.0
    %125 = vmatpush1.msra.mxu0 0.0
    %126 = vmatprep.subr.mxu0 0.0
    %127 = vmatpush1.msra.mxu0 0.0
    %128 = vmatprep.subr.mxu0 0.0
    %129 = vmatpush1.msra.mxu0 0.0
    %130 = vmatprep.subr.mxu0 0.0
    %131 = vmatpush1.msra.mxu0 %v58
    %132 = vmatprep.subr.mxu0 0.0
    %133 = vmatpush1.msra.mxu0 %v57
    %134 = vmatprep.subr.mxu0 0.0
    %135 = vmatpush1.msra.mxu0 %v56
    %136 = vmatprep.subr.mxu0 0.0
    %137 = vmatpush1.msra.mxu0 %v55
    %138 = vmatprep.subr.mxu0 0.0
    %139 = vmatpush2.msra.mxu0 0.0
    %140 = vmatprep.subr.mxu0 0.0
    %141 = vmatpush2.msra.mxu0 0.0
    %142 = vmatprep.subr.mxu0 0.0
    %143 = vmatpush2.msra.mxu0 0.0
    %144 = vmatprep.subr.mxu0 0.0
    %145 = vmatpush2.msra.mxu0 0.0
    %146 = vmatprep.subr.mxu0 0.0
    %147 = vmatpush2.msra.mxu0 0.0
    %148 = vmatprep.subr.mxu0 0.0
    %149 = vmatpush2.msra.mxu0 0.0
    %150 = vmatprep.subr.mxu0 0.0
    %151 = vmatpush2.msra.mxu0 0.0
    %152 = vmatprep.subr.mxu0 0.0
    %153 = vmatpush2.msra.mxu0 0.0
    %154 = vmatprep.subr.mxu0 0.0
    %155 = vmatpush2.msra.mxu0 0.0
    %156 = vmatprep.subr.mxu0 0.0
    %157 = vmatpush2.msra.mxu0 0.0
    %158 = vmatprep.subr.mxu0 0.0
    %159 = vmatpush2.msra.mxu0 0.0
    %160 = vmatprep.subr.mxu0 0.0
    %161 = vmatpush2.msra.mxu0 0.0
    %162 = vmatprep.subr.mxu0 0.0
    %163 = vmatpush2.msra.mxu0 0.0
    %164 = vmatprep.subr.mxu0 0.0
    %165 = vmatpush2.msra.mxu0 0.0
    %166 = vmatprep.subr.mxu0 0.0
    %167 = vmatpush2.msra.mxu0 0.0
    %168 = vmatprep.subr.mxu0 0.0
    %169 = vmatpush2.msra.mxu0 0.0
    %170 = vmatprep.mubr.f32.mxu0 0.0
    %171 = vmatmul.mubr.f32.gmra.mxu0 %v68
    %v172 = vpop.f32.mrf.mxu0
    %v173 = vadd.f32 %v64, %v172
    %v174 = vpop.f32.mrf.mxu0
    %175 = vmatprep.mubr.f32.mxu0 0.0
    %176 = vmatmul.mubr.f32.gmra.mxu0 %v71
    %v177 = vpop.f32.mrf.mxu0
    %v178 = vadd.f32 %v64, %v177
    %v179 = vpop.f32.mrf.mxu0
    %180 = vmatprep.mubr.f32.mxu0 0.0
    %181 = vmatmul.mubr.f32.gmra.mxu0 %v74
    %v182 = vpop.f32.mrf.mxu0
    %v183 = vadd.f32 %v64, %v182
    %v184 = vpop.f32.mrf.mxu0
    %185 = vmatprep.mubr.f32.mxu0 0.0
    %186 = vmatmul.mubr.f32.gmra.mxu0 %v77
    %v187 = vpop.f32.mrf.mxu0
    %v188 = vadd.f32 %v64, %v187
    %v189 = vpop.f32.mrf.mxu0
    %190 = vmatprep.mubr.f32.mxu0 0.0
    %191 = vmatmul.mubr.f32.gmra.mxu0 %v80
    %v192 = vpop.f32.mrf.mxu0
    %v193 = vadd.f32 %v64, %v192
    %v194 = vpop.f32.mrf.mxu0
    %195 = vmatprep.mubr.f32.mxu0 0.0
    %196 = vmatmul.mubr.f32.gmra.mxu0 %v83
    %v197 = vpop.f32.mrf.mxu0
    %v198 = vadd.f32 %v64, %v197
    %v199 = vpop.f32.mrf.mxu0
    %200 = vmatprep.mubr.f32.mxu0 0.0
    %201 = vmatmul.mubr.f32.gmra.mxu0 %v86
    %v202 = vpop.f32.mrf.mxu0
    %v203 = vadd.f32 %v64, %v202
    %v204 = vpop.f32.mrf.mxu0
    %205 = vmatprep.mubr.f32.mxu0 0.0
    %206 = vmatmul.mubr.f32.gmra.mxu0 %v89
    %v207 = vpop.f32.mrf.mxu0
    %v208 = vadd.f32 %v64, %v207
    %v209 = vpop.f32.mrf.mxu0
    %210 = vmatprep.mubr.f32.mxu0 0.0
    %211 = vmatmul.mubr.f32.gmra.mxu0 %v92
    %v212 = vpop.f32.mrf.mxu0
    %v213 = vadd.f32 %v64, %v212
    %v214 = vpop.f32.mrf.mxu0
    %215 = vmatprep.mubr.f32.mxu0 0.0
    %216 = vmatmul.mubr.f32.gmra.mxu0 %v95
    %v217 = vpop.f32.mrf.mxu0
    %v218 = vadd.f32 %v64, %v217
    %v219 = vpop.f32.mrf.mxu0
    %220 = vmatprep.mubr.f32.mxu0 0.0
    %221 = vmatmul.mubr.f32.gmra.mxu0 %v98
    %v222 = vpop.f32.mrf.mxu0
    %v223 = vadd.f32 %v64, %v222
    %v224 = vpop.f32.mrf.mxu0
    %225 = vmatprep.mubr.f32.mxu0 0.0
    %226 = vmatmul.mubr.f32.gmra.mxu0 %v101
    %v227 = vpop.f32.mrf.mxu0
    %v228 = vadd.f32 %v64, %v227
    %v229 = vpop.f32.mrf.mxu0
    %230 = vmatprep.mubr.f32.mxu0 0.0
    %231 = vmatmul.mubr.f32.gmra.mxu0 %v104
    %v232 = vpop.f32.mrf.mxu0
    %v233 = vadd.f32 %v64, %v232
    %v234 = vpop.f32.mrf.mxu0
    %235 = vdwg.mxu0
    %v236 = vmul.f32 %v42, %v42
    %v237 = vmul.f32 %v43, %v43
    %v238 = vmul.f32 %v44, %v44
    %v239 = vmul.f32 %v45, %v45
    %v240 = vmul.f32 %v46, %v46
    %v241 = vmul.f32 %v47, %v47
    %v242 = vmul.f32 %v48, %v48
    %v243 = vmul.f32 %v49, %v49
    %v244 = vmul.f32 %v50, %v50
    %v245 = vmul.f32 %v51, %v51
    %v246 = vmul.f32 %v52, %v52
    %v247 = vmul.f32 %v53, %v53
    %v248 = vmul.f32 %v54, %v54
    %v249 = vsel %vm66, %v236, 0.0
    %250 = vadd.xlane.f32.xlu0 %v249
    %v251 = vpop.xlane.xlu0 %250
    %v252 = vsel %vm66, %v237, 0.0
    %253 = vadd.xlane.f32.xlu0 %v252
    %v254 = vpop.xlane.xlu0 %253
    %v255 = vsel %vm66, %v238, 0.0
    %256 = vadd.xlane.f32.xlu0 %v255
    %v257 = vpop.xlane.xlu0 %256
    %v258 = vsel %vm66, %v239, 0.0
    %259 = vadd.xlane.f32.xlu0 %v258
    %v260 = vpop.xlane.xlu0 %259
    %v261 = vsel %vm66, %v240, 0.0
    %262 = vadd.xlane.f32.xlu0 %v261
    %v263 = vpop.xlane.xlu0 %262
    %v264 = vsel %vm66, %v241, 0.0
    %265 = vadd.xlane.f32.xlu0 %v264
    %v266 = vpop.xlane.xlu0 %265
    %v267 = vsel %vm66, %v242, 0.0
    %268 = vadd.xlane.f32.xlu0 %v267
    %v269 = vpop.xlane.xlu0 %268
    %v270 = vsel %vm66, %v243, 0.0
    %271 = vadd.xlane.f32.xlu0 %v270
    %v272 = vpop.xlane.xlu0 %271
    %v273 = vsel %vm66, %v244, 0.0
    %274 = vadd.xlane.f32.xlu0 %v273
    %v275 = vpop.xlane.xlu0 %274
    %v276 = vsel %vm66, %v245, 0.0
    %277 = vadd.xlane.f32.xlu0 %v276
    %v278 = vpop.xlane.xlu0 %277
    %v279 = vsel %vm66, %v246, 0.0
    %280 = vadd.xlane.f32.xlu0 %v279
    %v281 = vpop.xlane.xlu0 %280
    %v282 = vsel %vm66, %v247, 0.0
    %283 = vadd.xlane.f32.xlu0 %v282
    %v284 = vpop.xlane.xlu0 %283
    %v285 = vsel %vm66, %v248, 0.0
    %286 = vadd.xlane.f32.xlu0 %v285
    %v287 = vpop.xlane.xlu0 %286
    %v288 = vmul.f32 %v251, -0.5
    %v289 = vmul.f32 %v254, -0.5
    %v290 = vmul.f32 %v257, -0.5
    %v291 = vmul.f32 %v260, -0.5
    %v292 = vmul.f32 %v263, -0.5
    %v293 = vmul.f32 %v266, -0.5
    %v294 = vmul.f32 %v269, -0.5
    %v295 = vmul.f32 %v272, -0.5
    %v296 = vmul.f32 %v275, -0.5
    %v297 = vmul.f32 %v278, -0.5
    %v298 = vmul.f32 %v281, -0.5
    %v299 = vmul.f32 %v284, -0.5
    %v300 = vmul.f32 %v287, -0.5
    %v301 = vld [vmem:[%s1] sm:$0xff]
    %v302 = vld [vmem:[%s1 + $0x8] sm:$0xff]
    %v303 = vld [vmem:[%s1 + $0x10] sm:$0xff]
    %v304 = vld [vmem:[%s1 + $0x18] sm:$0xff]
    %v305 = vld [vmem:[%s1 + $0x20] sm:$0xff]
    %v306 = vld [vmem:[%s1 + $0x28] sm:$0xff]
    %v307 = vld [vmem:[%s1 + $0x30] sm:$0xff]
    %v308 = vld [vmem:[%s1 + $0x38] sm:$0xff]
    %v309 = vld [vmem:[%s1 + $0x40] sm:$0xff]
    %v310 = vld [vmem:[%s1 + $0x48] sm:$0xff]
    %v311 = vld [vmem:[%s1 + $0x50] sm:$0xff]
    %v312 = vld [vmem:[%s1 + $0x58] sm:$0xff]
    %v313 = vld [vmem:[%s1 + $0x60] sm:$0xff]
    %v314 = vlaneseq
    %v315 = vand.u32 %v314, 127
    %316 = vset.pattern.permute.xlu0 0
    %317 = vperm.xlu0 %316, %v301
    %v318 = vpop.permute.xlu0 %317
    %319 = vset.pattern.permute.xlu0 0
    %320 = vperm.xlu0 %319, %v302
    %v321 = vpop.permute.xlu0 %320
    %322 = vset.pattern.permute.xlu0 0
    %323 = vperm.xlu0 %322, %v303
    %v324 = vpop.permute.xlu0 %323
    %325 = vset.pattern.permute.xlu0 0
    %326 = vperm.xlu0 %325, %v304
    %v327 = vpop.permute.xlu0 %326
    %328 = vset.pattern.permute.xlu0 0
    %329 = vperm.xlu0 %328, %v305
    %v330 = vpop.permute.xlu0 %329
    %331 = vset.pattern.permute.xlu0 0
    %332 = vperm.xlu0 %331, %v306
    %v333 = vpop.permute.xlu0 %332
    %334 = vset.pattern.permute.xlu0 0
    %335 = vperm.xlu0 %334, %v307
    %v336 = vpop.permute.xlu0 %335
    %337 = vset.pattern.permute.xlu0 0
    %338 = vperm.xlu0 %337, %v308
    %v339 = vpop.permute.xlu0 %338
    %340 = vset.pattern.permute.xlu0 0
    %341 = vperm.xlu0 %340, %v309
    %v342 = vpop.permute.xlu0 %341
    %343 = vset.pattern.permute.xlu0 0
    %344 = vperm.xlu0 %343, %v310
    %v345 = vpop.permute.xlu0 %344
    %346 = vset.pattern.permute.xlu0 0
    %347 = vperm.xlu0 %346, %v311
    %v348 = vpop.permute.xlu0 %347
    %349 = vset.pattern.permute.xlu0 0
    %350 = vperm.xlu0 %349, %v312
    %v351 = vpop.permute.xlu0 %350
    %352 = vset.pattern.permute.xlu0 0
    %353 = vperm.xlu0 %352, %v313
    %v354 = vpop.permute.xlu0 %353
    %vm355 = vcmp.eq.s32.totalorder %v315, %v318
    %vm356 = vcmp.eq.s32.totalorder %v315, %v321
    %vm357 = vcmp.eq.s32.totalorder %v315, %v324
    %vm358 = vcmp.eq.s32.totalorder %v315, %v327
    %vm359 = vcmp.eq.s32.totalorder %v315, %v330
    %vm360 = vcmp.eq.s32.totalorder %v315, %v333
    %vm361 = vcmp.eq.s32.totalorder %v315, %v336
    %vm362 = vcmp.eq.s32.totalorder %v315, %v339
    %vm363 = vcmp.eq.s32.totalorder %v315, %v342
    %vm364 = vcmp.eq.s32.totalorder %v315, %v345
    %vm365 = vcmp.eq.s32.totalorder %v315, %v348
    %vm366 = vcmp.eq.s32.totalorder %v315, %v351
    %vm367 = vcmp.eq.s32.totalorder %v315, %v354
    %v368 = vsel %vm355, 1, 0
    %v369 = vsel %vm356, 1, 0
    %v370 = vsel %vm357, 1, 0
    %v371 = vsel %vm358, 1, 0
    %v372 = vsel %vm359, 1, 0
    %v373 = vsel %vm360, 1, 0
    %v374 = vsel %vm361, 1, 0
    %v375 = vsel %vm362, 1, 0
    %v376 = vsel %vm363, 1, 0
    %v377 = vsel %vm364, 1, 0
    %v378 = vsel %vm365, 1, 0
    %v379 = vsel %vm366, 1, 0
    %v380 = vsel %vm367, 1, 0
    %v381 = vcvt.s32.f32 %v368
    %v382 = vcvt.s32.f32 %v369
    %v383 = vcvt.s32.f32 %v370
    %v384 = vcvt.s32.f32 %v371
    %v385 = vcvt.s32.f32 %v372
    %v386 = vcvt.s32.f32 %v373
    %v387 = vcvt.s32.f32 %v374
    %v388 = vcvt.s32.f32 %v375
    %v389 = vcvt.s32.f32 %v376
    %v390 = vcvt.s32.f32 %v377
    %v391 = vcvt.s32.f32 %v378
    %v392 = vcvt.s32.f32 %v379
    %v393 = vcvt.s32.f32 %v380
    %v394 = vmul.f32 %v173, %v381
    %v395 = vmul.f32 %v178, %v382
    %v396 = vmul.f32 %v183, %v383
    %v397 = vmul.f32 %v188, %v384
    %v398 = vmul.f32 %v193, %v385
    %v399 = vmul.f32 %v198, %v386
    %v400 = vmul.f32 %v203, %v387
    %v401 = vmul.f32 %v208, %v388
    %v402 = vmul.f32 %v213, %v389
    %v403 = vmul.f32 %v218, %v390
    %v404 = vmul.f32 %v223, %v391
    %v405 = vmul.f32 %v228, %v392
    %v406 = vmul.f32 %v233, %v393
    %vm407 = vcmask 64512
    %v408 = vsel %vm407, %v394, 0.0
    %409 = vadd.xlane.f32.xlu0 %v408
    %v410 = vpop.xlane.xlu0 %409
    %v411 = vsel %vm407, %v395, 0.0
    %412 = vadd.xlane.f32.xlu0 %v411
    %v413 = vpop.xlane.xlu0 %412
    %v414 = vsel %vm407, %v396, 0.0
    %415 = vadd.xlane.f32.xlu0 %v414
    %v416 = vpop.xlane.xlu0 %415
    %v417 = vsel %vm407, %v397, 0.0
    %418 = vadd.xlane.f32.xlu0 %v417
    %v419 = vpop.xlane.xlu0 %418
    %v420 = vsel %vm407, %v398, 0.0
    %421 = vadd.xlane.f32.xlu0 %v420
    %v422 = vpop.xlane.xlu0 %421
    %v423 = vsel %vm407, %v399, 0.0
    %424 = vadd.xlane.f32.xlu0 %v423
    %v425 = vpop.xlane.xlu0 %424
    %v426 = vsel %vm407, %v400, 0.0
    %427 = vadd.xlane.f32.xlu0 %v426
    %v428 = vpop.xlane.xlu0 %427
    %v429 = vsel %vm407, %v401, 0.0
    %430 = vadd.xlane.f32.xlu0 %v429
    %v431 = vpop.xlane.xlu0 %430
    %v432 = vsel %vm407, %v402, 0.0
    %433 = vadd.xlane.f32.xlu0 %v432
    %v434 = vpop.xlane.xlu0 %433
    %v435 = vsel %vm407, %v403, 0.0
    %436 = vadd.xlane.f32.xlu0 %v435
    %v437 = vpop.xlane.xlu0 %436
    %v438 = vsel %vm407, %v404, 0.0
    %439 = vadd.xlane.f32.xlu0 %v438
    %v440 = vpop.xlane.xlu0 %439
    %v441 = vsel %vm407, %v405, 0.0
    %442 = vadd.xlane.f32.xlu0 %v441
    %v443 = vpop.xlane.xlu0 %442
    %v444 = vsel %vm407, %v406, 0.0
    %445 = vadd.xlane.f32.xlu0 %v444
    %v446 = vpop.xlane.xlu0 %445
    %v447 = vsel %vm407, %v173, -inf
    %448 = vmax.xlane.f32.xlu0 %v447
    %v449 = vpop.xlane.xlu0 %448
    %v450 = vsel %vm407, %v178, -inf
    %451 = vmax.xlane.f32.xlu0 %v450
    %v452 = vpop.xlane.xlu0 %451
    %v453 = vsel %vm407, %v183, -inf
    %454 = vmax.xlane.f32.xlu0 %v453
    %v455 = vpop.xlane.xlu0 %454
    %v456 = vsel %vm407, %v188, -inf
    %457 = vmax.xlane.f32.xlu0 %v456
    %v458 = vpop.xlane.xlu0 %457
    %v459 = vsel %vm407, %v193, -inf
    %460 = vmax.xlane.f32.xlu0 %v459
    %v461 = vpop.xlane.xlu0 %460
    %v462 = vsel %vm407, %v198, -inf
    %463 = vmax.xlane.f32.xlu0 %v462
    %v464 = vpop.xlane.xlu0 %463
    %v465 = vsel %vm407, %v203, -inf
    %466 = vmax.xlane.f32.xlu0 %v465
    %v467 = vpop.xlane.xlu0 %466
    %v468 = vsel %vm407, %v208, -inf
    %469 = vmax.xlane.f32.xlu0 %v468
    %v470 = vpop.xlane.xlu0 %469
    %v471 = vsel %vm407, %v213, -inf
    %472 = vmax.xlane.f32.xlu0 %v471
    %v473 = vpop.xlane.xlu0 %472
    %v474 = vsel %vm407, %v218, -inf
    %475 = vmax.xlane.f32.xlu0 %v474
    %v476 = vpop.xlane.xlu0 %475
    %v477 = vsel %vm407, %v223, -inf
    %478 = vmax.xlane.f32.xlu0 %v477
    %v479 = vpop.xlane.xlu0 %478
    %v480 = vsel %vm407, %v228, -inf
    %481 = vmax.xlane.f32.xlu0 %v480
    %v482 = vpop.xlane.xlu0 %481
    %v483 = vsel %vm407, %v233, -inf
    %484 = vmax.xlane.f32.xlu0 %v483
    %v485 = vpop.xlane.xlu0 %484
    %v486 = vsub.f32 %v173, %v449
    %v487 = vsub.f32 %v178, %v452
    %v488 = vsub.f32 %v183, %v455
    %v489 = vsub.f32 %v188, %v458
    %v490 = vsub.f32 %v193, %v461
    %v491 = vsub.f32 %v198, %v464
    %v492 = vsub.f32 %v203, %v467
    %v493 = vsub.f32 %v208, %v470
    %v494 = vsub.f32 %v213, %v473
    %v495 = vsub.f32 %v218, %v476
    %v496 = vsub.f32 %v223, %v479
    %v497 = vsub.f32 %v228, %v482
    %v498 = vsub.f32 %v233, %v485
    %v499 = vmul.f32 %v486, 1.442695
    %v500 = vpow.pop %v499
    %v501 = vmul.f32 %v487, 1.442695
    %v502 = vpow.pop %v501
    %v503 = vmul.f32 %v488, 1.442695
    %v504 = vpow.pop %v503
    %v505 = vmul.f32 %v489, 1.442695
    %v506 = vpow.pop %v505
    %v507 = vmul.f32 %v490, 1.442695
    %v508 = vpow.pop %v507
    %v509 = vmul.f32 %v491, 1.442695
    %v510 = vpow.pop %v509
    %v511 = vmul.f32 %v492, 1.442695
    %v512 = vpow.pop %v511
    %v513 = vmul.f32 %v493, 1.442695
    %v514 = vpow.pop %v513
    %v515 = vmul.f32 %v494, 1.442695
    %v516 = vpow.pop %v515
    %v517 = vmul.f32 %v495, 1.442695
    %v518 = vpow.pop %v517
    %v519 = vmul.f32 %v496, 1.442695
    %v520 = vpow.pop %v519
    %v521 = vmul.f32 %v497, 1.442695
    %v522 = vpow.pop %v521
    %v523 = vmul.f32 %v498, 1.442695
    %v524 = vpow.pop %v523
    %v525 = vsel %vm407, %v500, 0.0
    %526 = vadd.xlane.f32.xlu0 %v525
    %v527 = vpop.xlane.xlu0 %526
    %v528 = vsel %vm407, %v502, 0.0
    %529 = vadd.xlane.f32.xlu0 %v528
    %v530 = vpop.xlane.xlu0 %529
    %v531 = vsel %vm407, %v504, 0.0
    %532 = vadd.xlane.f32.xlu0 %v531
    %v533 = vpop.xlane.xlu0 %532
    %v534 = vsel %vm407, %v506, 0.0
    %535 = vadd.xlane.f32.xlu0 %v534
    %v536 = vpop.xlane.xlu0 %535
    %v537 = vsel %vm407, %v508, 0.0
    %538 = vadd.xlane.f32.xlu0 %v537
    %v539 = vpop.xlane.xlu0 %538
    %v540 = vsel %vm407, %v510, 0.0
    %541 = vadd.xlane.f32.xlu0 %v540
    %v542 = vpop.xlane.xlu0 %541
    %v543 = vsel %vm407, %v512, 0.0
    %544 = vadd.xlane.f32.xlu0 %v543
    %v545 = vpop.xlane.xlu0 %544
    %v546 = vsel %vm407, %v514, 0.0
    %547 = vadd.xlane.f32.xlu0 %v546
    %v548 = vpop.xlane.xlu0 %547
    %v549 = vsel %vm407, %v516, 0.0
    %550 = vadd.xlane.f32.xlu0 %v549
    %v551 = vpop.xlane.xlu0 %550
    %v552 = vsel %vm407, %v518, 0.0
    %553 = vadd.xlane.f32.xlu0 %v552
    %v554 = vpop.xlane.xlu0 %553
    %v555 = vsel %vm407, %v520, 0.0
    %556 = vadd.xlane.f32.xlu0 %v555
    %v557 = vpop.xlane.xlu0 %556
    %v558 = vsel %vm407, %v522, 0.0
    %559 = vadd.xlane.f32.xlu0 %v558
    %v560 = vpop.xlane.xlu0 %559
    %v561 = vsel %vm407, %v524, 0.0
    %562 = vadd.xlane.f32.xlu0 %v561
    %v563 = vpop.xlane.xlu0 %562
    %v564 = vlog2.pop %v527
    %v565 = vmul.f32 %v564, 0.6931472
    %v566 = vlog2.pop %v530
    %v567 = vmul.f32 %v566, 0.6931472
    %v568 = vlog2.pop %v533
    %v569 = vmul.f32 %v568, 0.6931472
    %v570 = vlog2.pop %v536
    %v571 = vmul.f32 %v570, 0.6931472
    %v572 = vlog2.pop %v539
    %v573 = vmul.f32 %v572, 0.6931472
    %v574 = vlog2.pop %v542
    %v575 = vmul.f32 %v574, 0.6931472
    %v576 = vlog2.pop %v545
    %v577 = vmul.f32 %v576, 0.6931472
    %v578 = vlog2.pop %v548
    %v579 = vmul.f32 %v578, 0.6931472
    %v580 = vlog2.pop %v551
    %v581 = vmul.f32 %v580, 0.6931472
    %v582 = vlog2.pop %v554
    %v583 = vmul.f32 %v582, 0.6931472
    %v584 = vlog2.pop %v557
    %v585 = vmul.f32 %v584, 0.6931472
    %v586 = vlog2.pop %v560
    %v587 = vmul.f32 %v586, 0.6931472
    %v588 = vlog2.pop %v563
    %v589 = vmul.f32 %v588, 0.6931472
    %v590 = vadd.f32 %v449, %v565
    %v591 = vadd.f32 %v452, %v567
    %v592 = vadd.f32 %v455, %v569
    %v593 = vadd.f32 %v458, %v571
    %v594 = vadd.f32 %v461, %v573
    %v595 = vadd.f32 %v464, %v575
    %v596 = vadd.f32 %v467, %v577
    %v597 = vadd.f32 %v470, %v579
    %v598 = vadd.f32 %v473, %v581
    %v599 = vadd.f32 %v476, %v583
    %v600 = vadd.f32 %v479, %v585
    %v601 = vadd.f32 %v482, %v587
    %v602 = vadd.f32 %v485, %v589
    %s603 = sld [smem:[#allocation3]]
    %v604 = vsub.f32 %v410, %v590
    %v605 = vsub.f32 %v413, %v591
    %v606 = vsub.f32 %v416, %v592
    %v607 = vsub.f32 %v419, %v593
    %v608 = vsub.f32 %v422, %v594
    %v609 = vsub.f32 %v425, %v595
    %v610 = vsub.f32 %v428, %v596
    %v611 = vsub.f32 %v431, %v597
    %v612 = vsub.f32 %v434, %v598
    %v613 = vsub.f32 %v437, %v599
    %v614 = vsub.f32 %v440, %v600
    %v615 = vsub.f32 %v443, %v601
    %v616 = vsub.f32 %v446, %v602
    %v617 = vstv %s603
    %v618 = vmul.f32 %v617, %v604
    %v619 = vmul.f32 %v617, %v605
    %v620 = vmul.f32 %v617, %v606
    %v621 = vmul.f32 %v617, %v607
    %v622 = vmul.f32 %v617, %v608
    %v623 = vmul.f32 %v617, %v609
    %v624 = vmul.f32 %v617, %v610
    %v625 = vmul.f32 %v617, %v611
    %v626 = vmul.f32 %v617, %v612
    %v627 = vmul.f32 %v617, %v613
    %v628 = vmul.f32 %v617, %v614
    %v629 = vmul.f32 %v617, %v615
    %v630 = vmul.f32 %v617, %v616
    %v631 = vadd.f32 %v288, %v618
    %v632 = vadd.f32 %v289, %v619
    %v633 = vadd.f32 %v290, %v620
    %v634 = vadd.f32 %v291, %v621
    %v635 = vadd.f32 %v292, %v622
    %v636 = vadd.f32 %v293, %v623
    %v637 = vadd.f32 %v294, %v624
    %v638 = vadd.f32 %v295, %v625
    %v639 = vadd.f32 %v296, %v626
    %v640 = vadd.f32 %v297, %v627
    %v641 = vadd.f32 %v298, %v628
    %v642 = vadd.f32 %v299, %v629
    %v643 = vadd.f32 %v300, %v630
    %644 = vset.pattern.permute.xlu0 1
    %645 = vperm.xlu0 %644, %v301
    %v646 = vpop.permute.xlu0 %645
    %647 = vset.pattern.permute.xlu0 1
    %648 = vperm.xlu0 %647, %v302
    %v649 = vpop.permute.xlu0 %648
    %650 = vset.pattern.permute.xlu0 1
    %651 = vperm.xlu0 %650, %v303
    %v652 = vpop.permute.xlu0 %651
    %653 = vset.pattern.permute.xlu0 1
    %654 = vperm.xlu0 %653, %v304
    %v655 = vpop.permute.xlu0 %654
    %656 = vset.pattern.permute.xlu0 1
    %657 = vperm.xlu0 %656, %v305
    %v658 = vpop.permute.xlu0 %657
    %659 = vset.pattern.permute.xlu0 1
    %660 = vperm.xlu0 %659, %v306
    %v661 = vpop.permute.xlu0 %660
    %662 = vset.pattern.permute.xlu0 1
    %663 = vperm.xlu0 %662, %v307
    %v664 = vpop.permute.xlu0 %663
    %665 = vset.pattern.permute.xlu0 1
    %666 = vperm.xlu0 %665, %v308
    %v667 = vpop.permute.xlu0 %666
    %668 = vset.pattern.permute.xlu0 1
    %669 = vperm.xlu0 %668, %v309
    %v670 = vpop.permute.xlu0 %669
    %671 = vset.pattern.permute.xlu0 1
    %672 = vperm.xlu0 %671, %v310
    %v673 = vpop.permute.xlu0 %672
    %674 = vset.pattern.permute.xlu0 1
    %675 = vperm.xlu0 %674, %v311
    %v676 = vpop.permute.xlu0 %675
    %677 = vset.pattern.permute.xlu0 1
    %678 = vperm.xlu0 %677, %v312
    %v679 = vpop.permute.xlu0 %678
    %680 = vset.pattern.permute.xlu0 1
    %681 = vperm.xlu0 %680, %v313
    %v682 = vpop.permute.xlu0 %681
    %vm683 = vcmp.eq.s32.totalorder %v315, %v646
    %vm684 = vcmp.eq.s32.totalorder %v315, %v649
    %vm685 = vcmp.eq.s32.totalorder %v315, %v652
    %vm686 = vcmp.eq.s32.totalorder %v315, %v655
    %vm687 = vcmp.eq.s32.totalorder %v315, %v658
    %vm688 = vcmp.eq.s32.totalorder %v315, %v661
    %vm689 = vcmp.eq.s32.totalorder %v315, %v664
    %vm690 = vcmp.eq.s32.totalorder %v315, %v667
    %vm691 = vcmp.eq.s32.totalorder %v315, %v670
    %vm692 = vcmp.eq.s32.totalorder %v315, %v673
    %vm693 = vcmp.eq.s32.totalorder %v315, %v676
    %vm694 = vcmp.eq.s32.totalorder %v315, %v679
    %vm695 = vcmp.eq.s32.totalorder %v315, %v682
    %v696 = vsel %vm683, 1, 0
    %v697 = vsel %vm684, 1, 0
    %v698 = vsel %vm685, 1, 0
    %v699 = vsel %vm686, 1, 0
    %v700 = vsel %vm687, 1, 0
    %v701 = vsel %vm688, 1, 0
    %v702 = vsel %vm689, 1, 0
    %v703 = vsel %vm690, 1, 0
    %v704 = vsel %vm691, 1, 0
    %v705 = vsel %vm692, 1, 0
    %v706 = vsel %vm693, 1, 0
    %v707 = vsel %vm694, 1, 0
    %v708 = vsel %vm695, 1, 0
    %v709 = vcvt.s32.f32 %v696
    %v710 = vcvt.s32.f32 %v697
    %v711 = vcvt.s32.f32 %v698
    %v712 = vcvt.s32.f32 %v699
    %v713 = vcvt.s32.f32 %v700
    %v714 = vcvt.s32.f32 %v701
    %v715 = vcvt.s32.f32 %v702
    %v716 = vcvt.s32.f32 %v703
    %v717 = vcvt.s32.f32 %v704
    %v718 = vcvt.s32.f32 %v705
    %v719 = vcvt.s32.f32 %v706
    %v720 = vcvt.s32.f32 %v707
    %v721 = vcvt.s32.f32 %v708
    %735 = vrot.lane.b32.xlu0 %v709, 8
    %v736 = vpop.permute.xlu0 %735
    %737 = vrot.lane.b32.xlu0 %v710, 8
    %v738 = vpop.permute.xlu0 %737
    %739 = vrot.lane.b32.xlu0 %v711, 8
    %v740 = vpop.permute.xlu0 %739
    %741 = vrot.lane.b32.xlu0 %v712, 8
    %v742 = vpop.permute.xlu0 %741
    %743 = vrot.lane.b32.xlu0 %v713, 8
    %v744 = vpop.permute.xlu0 %743
    %745 = vrot.lane.b32.xlu0 %v714, 8
    %v746 = vpop.permute.xlu0 %745
    %747 = vrot.lane.b32.xlu0 %v715, 8
    %v748 = vpop.permute.xlu0 %747
    %749 = vrot.lane.b32.xlu0 %v716, 8
    %v750 = vpop.permute.xlu0 %749
    %751 = vrot.lane.b32.xlu0 %v717, 8
    %v752 = vpop.permute.xlu0 %751
    %753 = vrot.lane.b32.xlu0 %v718, 8
    %v754 = vpop.permute.xlu0 %753
    %755 = vrot.lane.b32.xlu0 %v719, 8
    %v756 = vpop.permute.xlu0 %755
    %757 = vrot.lane.b32.xlu0 %v720, 8
    %v758 = vpop.permute.xlu0 %757
    %759 = vrot.lane.b32.xlu0 %v721, 8
    %v760 = vpop.permute.xlu0 %759
    %v774 = vmul.f32 %v173, %v736
    %v775 = vmul.f32 %v178, %v738
    %v776 = vmul.f32 %v183, %v740
    %v777 = vmul.f32 %v188, %v742
    %v778 = vmul.f32 %v193, %v744
    %v779 = vmul.f32 %v198, %v746
    %v780 = vmul.f32 %v203, %v748
    %v781 = vmul.f32 %v208, %v750
    %v782 = vmul.f32 %v213, %v752
    %v783 = vmul.f32 %v218, %v754
    %v784 = vmul.f32 %v223, %v756
    %v785 = vmul.f32 %v228, %v758
    %v786 = vmul.f32 %v233, %v760
    %800 = vrot.lane.b32.xlu0 %v774, 120
    %v801 = vpop.permute.xlu0 %800
    %802 = vrot.lane.b32.xlu0 %v775, 120
    %v803 = vpop.permute.xlu0 %802
    %804 = vrot.lane.b32.xlu0 %v776, 120
    %v805 = vpop.permute.xlu0 %804
    %806 = vrot.lane.b32.xlu0 %v777, 120
    %v807 = vpop.permute.xlu0 %806
    %808 = vrot.lane.b32.xlu0 %v778, 120
    %v809 = vpop.permute.xlu0 %808
    %810 = vrot.lane.b32.xlu0 %v779, 120
    %v811 = vpop.permute.xlu0 %810
    %812 = vrot.lane.b32.xlu0 %v780, 120
    %v813 = vpop.permute.xlu0 %812
    %814 = vrot.lane.b32.xlu0 %v781, 120
    %v815 = vpop.permute.xlu0 %814
    %816 = vrot.lane.b32.xlu0 %v782, 120
    %v817 = vpop.permute.xlu0 %816
    %818 = vrot.lane.b32.xlu0 %v783, 120
    %v819 = vpop.permute.xlu0 %818
    %820 = vrot.lane.b32.xlu0 %v784, 120
    %v821 = vpop.permute.xlu0 %820
    %822 = vrot.lane.b32.xlu0 %v785, 120
    %v823 = vpop.permute.xlu0 %822
    %824 = vrot.lane.b32.xlu0 %v786, 120
    %v825 = vpop.permute.xlu0 %824
    %v839 = vsel %vm407, %v801, 0.0
    %840 = vadd.xlane.f32.xlu0 %v839
    %v841 = vpop.xlane.xlu0 %840
    %v842 = vsel %vm407, %v803, 0.0
    %843 = vadd.xlane.f32.xlu0 %v842
    %v844 = vpop.xlane.xlu0 %843
    %v845 = vsel %vm407, %v805, 0.0
    %846 = vadd.xlane.f32.xlu0 %v845
    %v847 = vpop.xlane.xlu0 %846
    %v848 = vsel %vm407, %v807, 0.0
    %849 = vadd.xlane.f32.xlu0 %v848
    %v850 = vpop.xlane.xlu0 %849
    %v851 = vsel %vm407, %v809, 0.0
    %852 = vadd.xlane.f32.xlu0 %v851
    %v853 = vpop.xlane.xlu0 %852
    %v854 = vsel %vm407, %v811, 0.0
    %855 = vadd.xlane.f32.xlu0 %v854
    %v856 = vpop.xlane.xlu0 %855
    %v857 = vsel %vm407, %v813, 0.0
    %858 = vadd.xlane.f32.xlu0 %v857
    %v859 = vpop.xlane.xlu0 %858
    %v860 = vsel %vm407, %v815, 0.0
    %861 = vadd.xlane.f32.xlu0 %v860
    %v862 = vpop.xlane.xlu0 %861
    %v863 = vsel %vm407, %v817, 0.0
    %864 = vadd.xlane.f32.xlu0 %v863
    %v865 = vpop.xlane.xlu0 %864
    %v866 = vsel %vm407, %v819, 0.0
    %867 = vadd.xlane.f32.xlu0 %v866
    %v868 = vpop.xlane.xlu0 %867
    %v869 = vsel %vm407, %v821, 0.0
    %870 = vadd.xlane.f32.xlu0 %v869
    %v871 = vpop.xlane.xlu0 %870
    %v872 = vsel %vm407, %v823, 0.0
    %873 = vadd.xlane.f32.xlu0 %v872
    %v874 = vpop.xlane.xlu0 %873
    %v875 = vsel %vm407, %v825, 0.0
    %876 = vadd.xlane.f32.xlu0 %v875
    %v877 = vpop.xlane.xlu0 %876
    %vm878 = vcmask 130112
    %v879 = vsel %vm878, %v173, -inf
    %880 = vmax.xlane.f32.xlu0 %v879
    %v881 = vpop.xlane.xlu0 %880
    %v882 = vsel %vm878, %v178, -inf
    %883 = vmax.xlane.f32.xlu0 %v882
    %v884 = vpop.xlane.xlu0 %883
    %v885 = vsel %vm878, %v183, -inf
    %886 = vmax.xlane.f32.xlu0 %v885
    %v887 = vpop.xlane.xlu0 %886
    %v888 = vsel %vm878, %v188, -inf
    %889 = vmax.xlane.f32.xlu0 %v888
    %v890 = vpop.xlane.xlu0 %889
    %v891 = vsel %vm878, %v193, -inf
    %892 = vmax.xlane.f32.xlu0 %v891
    %v893 = vpop.xlane.xlu0 %892
    %v894 = vsel %vm878, %v198, -inf
    %895 = vmax.xlane.f32.xlu0 %v894
    %v896 = vpop.xlane.xlu0 %895
    %v897 = vsel %vm878, %v203, -inf
    %898 = vmax.xlane.f32.xlu0 %v897
    %v899 = vpop.xlane.xlu0 %898
    %v900 = vsel %vm878, %v208, -inf
    %901 = vmax.xlane.f32.xlu0 %v900
    %v902 = vpop.xlane.xlu0 %901
    %v903 = vsel %vm878, %v213, -inf
    %904 = vmax.xlane.f32.xlu0 %v903
    %v905 = vpop.xlane.xlu0 %904
    %v906 = vsel %vm878, %v218, -inf
    %907 = vmax.xlane.f32.xlu0 %v906
    %v908 = vpop.xlane.xlu0 %907
    %v909 = vsel %vm878, %v223, -inf
    %910 = vmax.xlane.f32.xlu0 %v909
    %v911 = vpop.xlane.xlu0 %910
    %v912 = vsel %vm878, %v228, -inf
    %913 = vmax.xlane.f32.xlu0 %v912
    %v914 = vpop.xlane.xlu0 %913
    %v915 = vsel %vm878, %v233, -inf
    %916 = vmax.xlane.f32.xlu0 %v915
    %v917 = vpop.xlane.xlu0 %916
    %v918 = vsub.f32 %v173, %v881
    %v919 = vsub.f32 %v178, %v884
    %v920 = vsub.f32 %v183, %v887
    %v921 = vsub.f32 %v188, %v890
    %v922 = vsub.f32 %v193, %v893
    %v923 = vsub.f32 %v198, %v896
    %v924 = vsub.f32 %v203, %v899
    %v925 = vsub.f32 %v208, %v902
    %v926 = vsub.f32 %v213, %v905
    %v927 = vsub.f32 %v218, %v908
    %v928 = vsub.f32 %v223, %v911
    %v929 = vsub.f32 %v228, %v914
    %v930 = vsub.f32 %v233, %v917
    %v931 = vmul.f32 %v918, 1.442695
    %v932 = vpow.pop %v931
    %v933 = vmul.f32 %v919, 1.442695
    %v934 = vpow.pop %v933
    %v935 = vmul.f32 %v920, 1.442695
    %v936 = vpow.pop %v935
    %v937 = vmul.f32 %v921, 1.442695
    %v938 = vpow.pop %v937
    %v939 = vmul.f32 %v922, 1.442695
    %v940 = vpow.pop %v939
    %v941 = vmul.f32 %v923, 1.442695
    %v942 = vpow.pop %v941
    %v943 = vmul.f32 %v924, 1.442695
    %v944 = vpow.pop %v943
    %v945 = vmul.f32 %v925, 1.442695
    %v946 = vpow.pop %v945
    %v947 = vmul.f32 %v926, 1.442695
    %v948 = vpow.pop %v947
    %v949 = vmul.f32 %v927, 1.442695
    %v950 = vpow.pop %v949
    %v951 = vmul.f32 %v928, 1.442695
    %v952 = vpow.pop %v951
    %v953 = vmul.f32 %v929, 1.442695
    %v954 = vpow.pop %v953
    %v955 = vmul.f32 %v930, 1.442695
    %v956 = vpow.pop %v955
    %970 = vrot.lane.b32.xlu0 %v932, 120
    %v971 = vpop.permute.xlu0 %970
    %972 = vrot.lane.b32.xlu0 %v934, 120
    %v973 = vpop.permute.xlu0 %972
    %974 = vrot.lane.b32.xlu0 %v936, 120
    %v975 = vpop.permute.xlu0 %974
    %976 = vrot.lane.b32.xlu0 %v938, 120
    %v977 = vpop.permute.xlu0 %976
    %978 = vrot.lane.b32.xlu0 %v940, 120
    %v979 = vpop.permute.xlu0 %978
    %980 = vrot.lane.b32.xlu0 %v942, 120
    %v981 = vpop.permute.xlu0 %980
    %982 = vrot.lane.b32.xlu0 %v944, 120
    %v983 = vpop.permute.xlu0 %982
    %984 = vrot.lane.b32.xlu0 %v946, 120
    %v985 = vpop.permute.xlu0 %984
    %986 = vrot.lane.b32.xlu0 %v948, 120
    %v987 = vpop.permute.xlu0 %986
    %988 = vrot.lane.b32.xlu0 %v950, 120
    %v989 = vpop.permute.xlu0 %988
    %990 = vrot.lane.b32.xlu0 %v952, 120
    %v991 = vpop.permute.xlu0 %990
    %992 = vrot.lane.b32.xlu0 %v954, 120
    %v993 = vpop.permute.xlu0 %992
    %994 = vrot.lane.b32.xlu0 %v956, 120
    %v995 = vpop.permute.xlu0 %994
    %v1009 = vsel %vm407, %v971, 0.0
    %1010 = vadd.xlane.f32.xlu0 %v1009
    %v1011 = vpop.xlane.xlu0 %1010
    %v1012 = vsel %vm407, %v973, 0.0
    %1013 = vadd.xlane.f32.xlu0 %v1012
    %v1014 = vpop.xlane.xlu0 %1013
    %v1015 = vsel %vm407, %v975, 0.0
    %1016 = vadd.xlane.f32.xlu0 %v1015
    %v1017 = vpop.xlane.xlu0 %1016
    %v1018 = vsel %vm407, %v977, 0.0
    %1019 = vadd.xlane.f32.xlu0 %v1018
    %v1020 = vpop.xlane.xlu0 %1019
    %v1021 = vsel %vm407, %v979, 0.0
    %1022 = vadd.xlane.f32.xlu0 %v1021
    %v1023 = vpop.xlane.xlu0 %1022
    %v1024 = vsel %vm407, %v981, 0.0
    %1025 = vadd.xlane.f32.xlu0 %v1024
    %v1026 = vpop.xlane.xlu0 %1025
    %v1027 = vsel %vm407, %v983, 0.0
    %1028 = vadd.xlane.f32.xlu0 %v1027
    %v1029 = vpop.xlane.xlu0 %1028
    %v1030 = vsel %vm407, %v985, 0.0
    %1031 = vadd.xlane.f32.xlu0 %v1030
    %v1032 = vpop.xlane.xlu0 %1031
    %v1033 = vsel %vm407, %v987, 0.0
    %1034 = vadd.xlane.f32.xlu0 %v1033
    %v1035 = vpop.xlane.xlu0 %1034
    %v1036 = vsel %vm407, %v989, 0.0
    %1037 = vadd.xlane.f32.xlu0 %v1036
    %v1038 = vpop.xlane.xlu0 %1037
    %v1039 = vsel %vm407, %v991, 0.0
    %1040 = vadd.xlane.f32.xlu0 %v1039
    %v1041 = vpop.xlane.xlu0 %1040
    %v1042 = vsel %vm407, %v993, 0.0
    %1043 = vadd.xlane.f32.xlu0 %v1042
    %v1044 = vpop.xlane.xlu0 %1043
    %v1045 = vsel %vm407, %v995, 0.0
    %1046 = vadd.xlane.f32.xlu0 %v1045
    %v1047 = vpop.xlane.xlu0 %1046
    %v1048 = vlog2.pop %v1011
    %v1049 = vmul.f32 %v1048, 0.6931472
    %v1050 = vlog2.pop %v1014
    %v1051 = vmul.f32 %v1050, 0.6931472
    %v1052 = vlog2.pop %v1017
    %v1053 = vmul.f32 %v1052, 0.6931472
    %v1054 = vlog2.pop %v1020
    %v1055 = vmul.f32 %v1054, 0.6931472
    %v1056 = vlog2.pop %v1023
    %v1057 = vmul.f32 %v1056, 0.6931472
    %v1058 = vlog2.pop %v1026
    %v1059 = vmul.f32 %v1058, 0.6931472
    %v1060 = vlog2.pop %v1029
    %v1061 = vmul.f32 %v1060, 0.6931472
    %v1062 = vlog2.pop %v1032
    %v1063 = vmul.f32 %v1062, 0.6931472
    %v1064 = vlog2.pop %v1035
    %v1065 = vmul.f32 %v1064, 0.6931472
    %v1066 = vlog2.pop %v1038
    %v1067 = vmul.f32 %v1066, 0.6931472
    %v1068 = vlog2.pop %v1041
    %v1069 = vmul.f32 %v1068, 0.6931472
    %v1070 = vlog2.pop %v1044
    %v1071 = vmul.f32 %v1070, 0.6931472
    %v1072 = vlog2.pop %v1047
    %v1073 = vmul.f32 %v1072, 0.6931472
    %v1074 = vadd.f32 %v881, %v1049
    %v1075 = vadd.f32 %v884, %v1051
    %v1076 = vadd.f32 %v887, %v1053
    %v1077 = vadd.f32 %v890, %v1055
    %v1078 = vadd.f32 %v893, %v1057
    %v1079 = vadd.f32 %v896, %v1059
    %v1080 = vadd.f32 %v899, %v1061
    %v1081 = vadd.f32 %v902, %v1063
    %v1082 = vadd.f32 %v905, %v1065
    %v1083 = vadd.f32 %v908, %v1067
    %v1084 = vadd.f32 %v911, %v1069
    %v1085 = vadd.f32 %v914, %v1071
    %v1086 = vadd.f32 %v917, %v1073
    %s1087 = sld [smem:[#allocation3 + $0x1]]
    %v1088 = vsub.f32 %v841, %v1074
    %v1089 = vsub.f32 %v844, %v1075
    %v1090 = vsub.f32 %v847, %v1076
    %v1091 = vsub.f32 %v850, %v1077
    %v1092 = vsub.f32 %v853, %v1078
    %v1093 = vsub.f32 %v856, %v1079
    %v1094 = vsub.f32 %v859, %v1080
    %v1095 = vsub.f32 %v862, %v1081
    %v1096 = vsub.f32 %v865, %v1082
    %v1097 = vsub.f32 %v868, %v1083
    %v1098 = vsub.f32 %v871, %v1084
    %v1099 = vsub.f32 %v874, %v1085
    %v1100 = vsub.f32 %v877, %v1086
    %v1101 = vstv %s1087
    %v1102 = vmul.f32 %v1101, %v1088
    %v1103 = vmul.f32 %v1101, %v1089
    %v1104 = vmul.f32 %v1101, %v1090
    %v1105 = vmul.f32 %v1101, %v1091
    %v1106 = vmul.f32 %v1101, %v1092
    %v1107 = vmul.f32 %v1101, %v1093
    %v1108 = vmul.f32 %v1101, %v1094
    %v1109 = vmul.f32 %v1101, %v1095
    %v1110 = vmul.f32 %v1101, %v1096
    %v1111 = vmul.f32 %v1101, %v1097
    %v1112 = vmul.f32 %v1101, %v1098
    %v1113 = vmul.f32 %v1101, %v1099
    %v1114 = vmul.f32 %v1101, %v1100
    %v1115 = vadd.f32 %v631, %v1102
    %v1116 = vadd.f32 %v632, %v1103
    %v1117 = vadd.f32 %v633, %v1104
    %v1118 = vadd.f32 %v634, %v1105
    %v1119 = vadd.f32 %v635, %v1106
    %v1120 = vadd.f32 %v636, %v1107
    %v1121 = vadd.f32 %v637, %v1108
    %v1122 = vadd.f32 %v638, %v1109
    %v1123 = vadd.f32 %v639, %v1110
    %v1124 = vadd.f32 %v640, %v1111
    %v1125 = vadd.f32 %v641, %v1112
    %v1126 = vadd.f32 %v642, %v1113
    %v1127 = vadd.f32 %v643, %v1114
    %v1128 = vld [vmem:[%s2] sm:$0xff]
    %v1129 = vld [vmem:[%s2 + $0x8] sm:$0xff]
    %v1130 = vld [vmem:[%s2 + $0x10] sm:$0xff]
    %v1131 = vld [vmem:[%s2 + $0x18] sm:$0xff]
    %v1132 = vld [vmem:[%s2 + $0x20] sm:$0xff]
    %v1133 = vld [vmem:[%s2 + $0x28] sm:$0xff]
    %v1134 = vld [vmem:[%s2 + $0x30] sm:$0xff]
    %v1135 = vld [vmem:[%s2 + $0x38] sm:$0xff]
    %v1136 = vld [vmem:[%s2 + $0x40] sm:$0xff]
    %v1137 = vld [vmem:[%s2 + $0x48] sm:$0xff]
    %v1138 = vld [vmem:[%s2 + $0x50] sm:$0xff]
    %v1139 = vld [vmem:[%s2 + $0x58] sm:$0xff]
    %v1140 = vld [vmem:[%s2 + $0x60] sm:$0xff]
    %1154 = vrot.lane.b32.xlu0 %v1128, 16
    %v1155 = vpop.permute.xlu0 %1154
    %1156 = vrot.lane.b32.xlu0 %v1129, 16
    %v1157 = vpop.permute.xlu0 %1156
    %1158 = vrot.lane.b32.xlu0 %v1130, 16
    %v1159 = vpop.permute.xlu0 %1158
    %1160 = vrot.lane.b32.xlu0 %v1131, 16
    %v1161 = vpop.permute.xlu0 %1160
    %1162 = vrot.lane.b32.xlu0 %v1132, 16
    %v1163 = vpop.permute.xlu0 %1162
    %1164 = vrot.lane.b32.xlu0 %v1133, 16
    %v1165 = vpop.permute.xlu0 %1164
    %1166 = vrot.lane.b32.xlu0 %v1134, 16
    %v1167 = vpop.permute.xlu0 %1166
    %1168 = vrot.lane.b32.xlu0 %v1135, 16
    %v1169 = vpop.permute.xlu0 %1168
    %1170 = vrot.lane.b32.xlu0 %v1136, 16
    %v1171 = vpop.permute.xlu0 %1170
    %1172 = vrot.lane.b32.xlu0 %v1137, 16
    %v1173 = vpop.permute.xlu0 %1172
    %1174 = vrot.lane.b32.xlu0 %v1138, 16
    %v1175 = vpop.permute.xlu0 %1174
    %1176 = vrot.lane.b32.xlu0 %v1139, 16
    %v1177 = vpop.permute.xlu0 %1176
    %1178 = vrot.lane.b32.xlu0 %v1140, 16
    %v1179 = vpop.permute.xlu0 %1178
    %v1193 = vsub.f32 %v173, %v1155
    %v1194 = vsub.f32 %v178, %v1157
    %v1195 = vsub.f32 %v183, %v1159
    %v1196 = vsub.f32 %v188, %v1161
    %v1197 = vsub.f32 %v193, %v1163
    %v1198 = vsub.f32 %v198, %v1165
    %v1199 = vsub.f32 %v203, %v1167
    %v1200 = vsub.f32 %v208, %v1169
    %v1201 = vsub.f32 %v213, %v1171
    %v1202 = vsub.f32 %v218, %v1173
    %v1203 = vsub.f32 %v223, %v1175
    %v1204 = vsub.f32 %v228, %v1177
    %v1205 = vsub.f32 %v233, %v1179
    %v1206 = vld [vmem:[#allocation2] sm:$0x1]
    %v1208 = vlaneseq
    %v1209 = vshrl.u32 %v1208, 7
    %v1210 = vsub.s32 0, %v1209
    %v1211 = vrot.slane %v1206, %v1210
    %1226 = vrot.lane.b32.xlu0 %v1193, 112
    %v1227 = vpop.permute.xlu0 %1226
    %1228 = vrot.lane.b32.xlu0 %v1194, 112
    %v1229 = vpop.permute.xlu0 %1228
    %1230 = vrot.lane.b32.xlu0 %v1195, 112
    %v1231 = vpop.permute.xlu0 %1230
    %1232 = vrot.lane.b32.xlu0 %v1196, 112
    %v1233 = vpop.permute.xlu0 %1232
    %1234 = vrot.lane.b32.xlu0 %v1197, 112
    %v1235 = vpop.permute.xlu0 %1234
    %1236 = vrot.lane.b32.xlu0 %v1198, 112
    %v1237 = vpop.permute.xlu0 %1236
    %1238 = vrot.lane.b32.xlu0 %v1199, 112
    %v1239 = vpop.permute.xlu0 %1238
    %1240 = vrot.lane.b32.xlu0 %v1200, 112
    %v1241 = vpop.permute.xlu0 %1240
    %1242 = vrot.lane.b32.xlu0 %v1201, 112
    %v1243 = vpop.permute.xlu0 %1242
    %1244 = vrot.lane.b32.xlu0 %v1202, 112
    %v1245 = vpop.permute.xlu0 %1244
    %1246 = vrot.lane.b32.xlu0 %v1203, 112
    %v1247 = vpop.permute.xlu0 %1246
    %1248 = vrot.lane.b32.xlu0 %v1204, 112
    %v1249 = vpop.permute.xlu0 %1248
    %1250 = vrot.lane.b32.xlu0 %v1205, 112
    %v1251 = vpop.permute.xlu0 %1250
    %v1265 = vmul.f32 %v1211, %v1227
    %v1266 = vmul.f32 %v1211, %v1229
    %v1267 = vmul.f32 %v1211, %v1231
    %v1268 = vmul.f32 %v1211, %v1233
    %v1269 = vmul.f32 %v1211, %v1235
    %v1270 = vmul.f32 %v1211, %v1237
    %v1271 = vmul.f32 %v1211, %v1239
    %v1272 = vmul.f32 %v1211, %v1241
    %v1273 = vmul.f32 %v1211, %v1243
    %v1274 = vmul.f32 %v1211, %v1245
    %v1275 = vmul.f32 %v1211, %v1247
    %v1276 = vmul.f32 %v1211, %v1249
    %v1277 = vmul.f32 %v1211, %v1251
    %v1278 = vmul.f32 %v1265, %v1227
    %v1279 = vmul.f32 %v1266, %v1229
    %v1280 = vmul.f32 %v1267, %v1231
    %v1281 = vmul.f32 %v1268, %v1233
    %v1282 = vmul.f32 %v1269, %v1235
    %v1283 = vmul.f32 %v1270, %v1237
    %v1284 = vmul.f32 %v1271, %v1239
    %v1285 = vmul.f32 %v1272, %v1241
    %v1286 = vmul.f32 %v1273, %v1243
    %v1287 = vmul.f32 %v1274, %v1245
    %v1288 = vmul.f32 %v1275, %v1247
    %v1289 = vmul.f32 %v1276, %v1249
    %v1290 = vmul.f32 %v1277, %v1251
    %v1291 = vadd.f32 %v1278, 0.0
    %v1292 = vadd.f32 %v1279, 0.0
    %v1293 = vadd.f32 %v1280, 0.0
    %v1294 = vadd.f32 %v1281, 0.0
    %v1295 = vadd.f32 %v1282, 0.0
    %v1296 = vadd.f32 %v1283, 0.0
    %v1297 = vadd.f32 %v1284, 0.0
    %v1298 = vadd.f32 %v1285, 0.0
    %v1299 = vadd.f32 %v1286, 0.0
    %v1300 = vadd.f32 %v1287, 0.0
    %v1301 = vadd.f32 %v1288, 0.0
    %v1302 = vadd.f32 %v1289, 0.0
    %v1303 = vadd.f32 %v1290, 0.0
    %v1304 = vadd.f32 %v1115, %v1291
    %v1305 = vadd.f32 %v1116, %v1292
    %v1306 = vadd.f32 %v1117, %v1293
    %v1307 = vadd.f32 %v1118, %v1294
    %v1308 = vadd.f32 %v1119, %v1295
    %v1309 = vadd.f32 %v1120, %v1296
    %v1310 = vadd.f32 %v1121, %v1297
    %v1311 = vadd.f32 %v1122, %v1298
    %v1312 = vadd.f32 %v1123, %v1299
    %v1313 = vadd.f32 %v1124, %v1300
    %v1314 = vadd.f32 %v1125, %v1301
    %v1315 = vadd.f32 %v1126, %v1302
    %v1316 = vadd.f32 %v1127, %v1303
    %v1317 = vadd.f32 %v1304, 0.0
    %v1318 = vadd.f32 %v1305, 0.0
    %v1319 = vadd.f32 %v1306, 0.0
    %v1320 = vadd.f32 %v1307, 0.0
    %v1321 = vadd.f32 %v1308, 0.0
    %v1322 = vadd.f32 %v1309, 0.0
    %v1323 = vadd.f32 %v1310, 0.0
    %v1324 = vadd.f32 %v1311, 0.0
    %v1325 = vadd.f32 %v1312, 0.0
    %v1326 = vadd.f32 %v1313, 0.0
    %v1327 = vadd.f32 %v1314, 0.0
    %v1328 = vadd.f32 %v1315, 0.0
    %v1329 = vadd.f32 %v1316, 0.0
    %1343 = vset.pattern.permute.xlu0 0
    %1344 = vperm.xlu0 %1343, %v1317
    %v1345 = vpop.permute.xlu0 %1344
    %1346 = vset.pattern.permute.xlu0 0
    %1347 = vperm.xlu0 %1346, %v1318
    %v1348 = vpop.permute.xlu0 %1347
    %1349 = vset.pattern.permute.xlu0 0
    %1350 = vperm.xlu0 %1349, %v1319
    %v1351 = vpop.permute.xlu0 %1350
    %1352 = vset.pattern.permute.xlu0 0
    %1353 = vperm.xlu0 %1352, %v1320
    %v1354 = vpop.permute.xlu0 %1353
    %1355 = vset.pattern.permute.xlu0 0
    %1356 = vperm.xlu0 %1355, %v1321
    %v1357 = vpop.permute.xlu0 %1356
    %1358 = vset.pattern.permute.xlu0 0
    %1359 = vperm.xlu0 %1358, %v1322
    %v1360 = vpop.permute.xlu0 %1359
    %1361 = vset.pattern.permute.xlu0 0
    %1362 = vperm.xlu0 %1361, %v1323
    %v1363 = vpop.permute.xlu0 %1362
    %1364 = vset.pattern.permute.xlu0 0
    %1365 = vperm.xlu0 %1364, %v1324
    %v1366 = vpop.permute.xlu0 %1365
    %1367 = vset.pattern.permute.xlu0 0
    %1368 = vperm.xlu0 %1367, %v1325
    %v1369 = vpop.permute.xlu0 %1368
    %1370 = vset.pattern.permute.xlu0 0
    %1371 = vperm.xlu0 %1370, %v1326
    %v1372 = vpop.permute.xlu0 %1371
    %1373 = vset.pattern.permute.xlu0 0
    %1374 = vperm.xlu0 %1373, %v1327
    %v1375 = vpop.permute.xlu0 %1374
    %1376 = vset.pattern.permute.xlu0 0
    %1377 = vperm.xlu0 %1376, %v1328
    %v1378 = vpop.permute.xlu0 %1377
    %1379 = vset.pattern.permute.xlu0 0
    %1380 = vperm.xlu0 %1379, %v1329
    %v1381 = vpop.permute.xlu0 %1380
    %v1382 = vlaneseq
    %v1383 = vshrl.u32 %v1382, 7
    %v1384 = vsub.s32 %v315, %v1383
    %v1385 = vrot.slane %v1345, %v1384
    %v1386 = vadd.s32 %v315, 4294967288
    %v1387 = vlaneseq
    %v1388 = vshrl.u32 %v1387, 7
    %v1389 = vsub.s32 %v1386, %v1388
    %v1390 = vrot.slane %v1348, %v1389
    %v1391 = vsel %vm878, %v1390, %v1385
    %v1392 = vadd.s32 %v315, 4294967280
    %v1393 = vlaneseq
    %v1394 = vshrl.u32 %v1393, 7
    %v1395 = vsub.s32 %v1392, %v1394
    %v1396 = vrot.slane %v1351, %v1395
    %vm1397 = vcmask 195712
    %v1398 = vsel %vm1397, %v1396, %v1391
    %v1399 = vadd.s32 %v315, 4294967272
    %v1400 = vlaneseq
    %v1401 = vshrl.u32 %v1400, 7
    %v1402 = vsub.s32 %v1399, %v1401
    %v1403 = vrot.slane %v1354, %v1402
    %vm1404 = vcmask 261312
    %v1405 = vsel %vm1404, %v1403, %v1398
    %v1406 = vadd.s32 %v315, 4294967264
    %v1407 = vlaneseq
    %v1408 = vshrl.u32 %v1407, 7
    %v1409 = vsub.s32 %v1406, %v1408
    %v1410 = vrot.slane %v1357, %v1409
    %vm1411 = vcmask 326912
    %v1412 = vsel %vm1411, %v1410, %v1405
    %v1413 = vadd.s32 %v315, 4294967256
    %v1414 = vlaneseq
    %v1415 = vshrl.u32 %v1414, 7
    %v1416 = vsub.s32 %v1413, %v1415
    %v1417 = vrot.slane %v1360, %v1416
    %vm1418 = vcmask 392512
    %v1419 = vsel %vm1418, %v1417, %v1412
    %v1420 = vadd.s32 %v315, 4294967248
    %v1421 = vlaneseq
    %v1422 = vshrl.u32 %v1421, 7
    %v1423 = vsub.s32 %v1420, %v1422
    %v1424 = vrot.slane %v1363, %v1423
    %vm1425 = vcmask 458112
    %v1426 = vsel %vm1425, %v1424, %v1419
    %v1427 = vadd.s32 %v315, 4294967240
    %v1428 = vlaneseq
    %v1429 = vshrl.u32 %v1428, 7
    %v1430 = vsub.s32 %v1427, %v1429
    %v1431 = vrot.slane %v1366, %v1430
    %vm1432 = vcmask 523712
    %v1433 = vsel %vm1432, %v1431, %v1426
    %v1434 = vadd.s32 %v315, 4294967232
    %v1435 = vlaneseq
    %v1436 = vshrl.u32 %v1435, 7
    %v1437 = vsub.s32 %v1434, %v1436
    %v1438 = vrot.slane %v1369, %v1437
    %vm1439 = vcmask 589312
    %v1440 = vsel %vm1439, %v1438, %v1433
    %v1441 = vadd.s32 %v315, 4294967224
    %v1442 = vlaneseq
    %v1443 = vshrl.u32 %v1442, 7
    %v1444 = vsub.s32 %v1441, %v1443
    %v1445 = vrot.slane %v1372, %v1444
    %vm1446 = vcmask 654912
    %v1447 = vsel %vm1446, %v1445, %v1440
    %v1448 = vadd.s32 %v315, 4294967216
    %v1449 = vlaneseq
    %v1450 = vshrl.u32 %v1449, 7
    %v1451 = vsub.s32 %v1448, %v1450
    %v1452 = vrot.slane %v1375, %v1451
    %vm1453 = vcmask 720512
    %v1454 = vsel %vm1453, %v1452, %v1447
    %v1455 = vadd.s32 %v315, 4294967208
    %v1456 = vlaneseq
    %v1457 = vshrl.u32 %v1456, 7
    %v1458 = vsub.s32 %v1455, %v1457
    %v1459 = vrot.slane %v1378, %v1458
    %vm1460 = vcmask 786112
    %v1461 = vsel %vm1460, %v1459, %v1454
    %v1462 = vadd.s32 %v315, 4294967200
    %v1463 = vlaneseq
    %v1464 = vshrl.u32 %v1463, 7
    %v1465 = vsub.s32 %v1462, %v1464
    %v1466 = vrot.slane %v1381, %v1465
    %vm1467 = vcmask 851712
    %v1468 = vsel %vm1467, %v1466, %v1461
    %vm1470 = vcmask 843776
    %1471 = vst.msk [vmem:[#allocation6] sm:$0x1] %vm1470, %v1468
    // Predicated region
    $region34: #{tpu_custom_call.1} parent=1 // pred_check
      _
    $region35: #{tpu_custom_call.1} parent=1 // pred_check_branch
      %1473 = sbr.rel (0) target = $region37
    $region36: #{tpu_custom_call.1} parent=1 // pred_region
      %s1475 = ssub.s32 16, 16
      %1476 = vsyncadd [#allocation4], %s1475
      %s1478 = sshll.u32 [#allocation6], 4
      %s1479 = int_to_ptr.vmem [resolvable:$true] %s1478
      %1481 = dma.vmem_to_hbm [thread:$0]  %s1479, 16, %s7, [#allocation4]
    $region37: #{tpu_custom_call.1} parent=1 // pred_fallthru
      _
    // Predicated region
    $region38: #{tpu_custom_call.1} parent=1 // pred_check
      _
    $region39: #{tpu_custom_call.1} parent=1 // pred_check_branch
      %1483 = sbr.rel (0) target = $region41
    $region40: #{tpu_custom_call.1} parent=1 // pred_region
      %1484 = dma.done [#allocation4], 16
    $region41: #{tpu_custom_call.1} parent=1 // pred_fallthru
      _
    %1485 = vsyncpa [#allocation4], 1
    %1486 = vsyncpa [#allocation5], 1

</llo_original>
